<compile_context>
chip_gen: v6e
topology: v6e:2x2x1
jax: 0.10.0
libtpu: 0.0.40
codegen_flags: <defaults>
</compile_context>

<pallas_src>
import functools

import jax
import jax.numpy as jnp
import numpy as np
from jax.experimental import pallas as pl
from jax.experimental.pallas import tpu as pltpu


def _round_up(x, m):
    return ((x + m - 1) // m) * m


def _kl_knn_kernel(s1_ref, sq1_ref, col_ref, cnorm_ref, out_ref,
                   nu2_ref, rho2_ref, *, n1, tm, tn, n_j2, n_j):
    """Online-min over column tiles of the pairwise squared-distance matrix.

    Column tiles j < n_j2 come from s2 (nearest-in-Q -> nu), tiles j >= n_j2
    come from s1 (nearest-in-P excluding self -> rho).
    """
    i = pl.program_id(0)
    j = pl.program_id(1)

    @pl.when(j == 0)
    def _():
        nu2_ref[...] = jnp.full_like(nu2_ref, jnp.inf)
        rho2_ref[...] = jnp.full_like(rho2_ref, jnp.inf)

    # ||a - b||^2 = ||a||^2 + ||b||^2 - 2 a.b   (single MXU pass per tile).
    dot = jax.lax.dot_general(s1_ref[...], col_ref[...],
                              (((1,), (1,)), ((), ())),
                              preferred_element_type=jnp.float32)      # (tm, tn)
    dist = jnp.maximum(sq1_ref[...] + cnorm_ref[...] - 2.0 * dot, 0.0)

    # Mask the self-distance on s1-phase tiles (global row == global col).
    # For s2-phase tiles the global column index is negative -> no-op.
    grow = i * tm + jax.lax.broadcasted_iota(jnp.int32, (tm, tn), 0)
    gcol = (j - n_j2) * tn + jax.lax.broadcasted_iota(jnp.int32, (tm, tn), 1)
    dist = jnp.where(grow == gcol, jnp.inf, dist)

    rmin = jnp.min(dist, axis=1, keepdims=True)                        # (tm, 1)

    @pl.when(j < n_j2)
    def _():
        nu2_ref[...] = jnp.minimum(nu2_ref[...], rmin)

    @pl.when(j >= n_j2)
    def _():
        rho2_ref[...] = jnp.minimum(rho2_ref[...], rmin)

    @pl.when(j == n_j - 1)
    def _():
        row_idx = i * tm + jax.lax.broadcasted_iota(jnp.int32, (tm, 1), 0)
        valid = row_idx < n1
        # log(nu/rho) = 0.5*(log(nu^2) - log(rho^2)); "rho==0 -> 1e-10" of the
        # reference is exactly the 1e-20 clamp on rho^2.
        term = 0.5 * (jnp.log(nu2_ref[...])
                      - jnp.log(jnp.maximum(rho2_ref[...], 1e-20)))
        out_ref[...] = jnp.where(valid, term, 0.0)


def kl_div_loss_with_knn(s1, s2, k=1):
    """Forward pass of KL_div_loss_with_knn (naive kNN estimator, k=1)."""
    # TODO(synk): general k needs a k-th order statistic (in-kernel partial
    # sort); only k=1 (the module's default) is implemented.
    assert k == 1
    s1 = jnp.asarray(s1, jnp.float32).reshape(s1.shape[0], -1)
    s2 = jnp.asarray(s2, jnp.float32).reshape(s2.shape[0], -1)
    assert s1.ndim == s2.ndim == 2 and s1.shape[1] == s2.shape[1]
    n1, d = s1.shape
    n2 = s2.shape[0]
    assert n1 >= 2 and n2 >= 1

    # Tile plan: (tm, tn) distance tile + double-buffered (tm,D)/(tn,D) input
    # tiles stay a few MiB -> fits the 32 MiB scoped-VMEM budget on
    # v5e/v6e/v7x.  TODO(synk): tile the feature dim D as well for very large D.
    tm = min(256, _round_up(n1, 8))
    tn = min(512, _round_up(max(n1, n2), 128))

    n1p = _round_up(n1, tm)            # padded s1 rows
    n2c = _round_up(n2, tn)            # padded s2 columns
    n1c = _round_up(n1, tn)            # padded s1 columns
    num_i = n1p // tm
    n_j2 = n2c // tn
    n_j = n_j2 + n1c // tn

    # Pad data with zero rows; padded COLUMNS get +inf squared norms so their
    # distances are +inf and never win the min.  Padded ROWS are masked out of
    # the log-sum inside the kernel.
    s1_rows = jnp.pad(s1, ((0, n1p - n1), (0, 0)))
    sq1_rows = jnp.sum(s1_rows * s1_rows, axis=1, keepdims=True)        # (n1p, 1)

    cols = jnp.concatenate(
        [jnp.pad(s2, ((0, n2c - n2), (0, 0))),
         jnp.pad(s1, ((0, n1c - n1), (0, 0)))], axis=0)                 # (n2c+n1c, D)
    cnorm = jnp.concatenate([
        jnp.pad(jnp.sum(s2 * s2, axis=1), (0, n2c - n2), constant_values=jnp.inf),
        jnp.pad(jnp.sum(s1 * s1, axis=1), (0, n1c - n1), constant_values=jnp.inf),
    ])[None, :]                                                         # (1, n2c+n1c)

    kernel = functools.partial(_kl_knn_kernel, n1=n1, tm=tm, tn=tn,
                               n_j2=n_j2, n_j=n_j)

    per_row = pl.pallas_call(
        kernel,
        out_shape=jax.ShapeDtypeStruct((n1p, 1), jnp.float32),
        grid_spec=pltpu.PrefetchScalarGridSpec(
            num_scalar_prefetch=0,
            grid=(num_i, n_j),
            in_specs=[
                pl.BlockSpec((tm, d), lambda i, j: (i, 0)),   # s1 row tile
                pl.BlockSpec((tm, 1), lambda i, j: (i, 0)),   # ||s1 row||^2
                pl.BlockSpec((tn, d), lambda i, j: (j, 0)),   # [s2;s1] column tile
                pl.BlockSpec((1, tn), lambda i, j: (0, j)),   # column ||.||^2 (lanes)
            ],
            out_specs=pl.BlockSpec((tm, 1), lambda i, j: (i, 0)),
            scratch_shapes=[pltpu.VMEM((tm, 1), jnp.float32),   # running min nu^2
                            pltpu.VMEM((tm, 1), jnp.float32)],  # running min rho^2
        ),
        compiler_params=pltpu.CompilerParams(
            dimension_semantics=("parallel", "arbitrary"),
            vmem_limit_bytes=32 * 1024 * 1024,
        ),
    )(s1_rows, sq1_rows, cols, cnorm)

    base = jnp.log(jnp.float32(n2) / jnp.float32(n1 - 1))
    return base + (jnp.float32(d) / jnp.float32(n1)) * jnp.sum(per_row)


def _reference(s1, s2):
    """Pure-numpy transcription of the PyTorch naive_estimator (k=1)."""
    s1 = np.asarray(s1, np.float32).reshape(s1.shape[0], -1)
    s2 = np.asarray(s2, np.float32).reshape(s2.shape[0], -1)
    n, m = s1.shape[0], s2.shape[0]
    d = float(s1.shape[1])
    D = np.log(np.float32(m / (n - 1)))
    for i in range(n):
        nu = np.sort(np.linalg.norm(s2 - s1[i], axis=1))[0]
        rho = np.sort(np.linalg.norm(s1 - s1[i], axis=1))[1]
        if rho == 0:
            rho = 1e-10
        D += d / n * np.log(nu / rho)
    return float(D)


if __name__ == "__main__":
    key = jax.random.PRNGKey(0)
    k1, k2, k3, k4 = jax.random.split(key, 4)

    # Small test (exercises the module's reshape path): N1=16, N2=12, D=4*8=32.
    s1 = jax.random.normal(k1, (16, 4, 8), dtype=jnp.float32)
    s2 = 0.5 * jax.random.normal(k2, (12, 4, 8), dtype=jnp.float32) + 0.25
    out_small = jax.block_until_ready(kl_div_loss_with_knn(s1, s2, k=1))
    ref_small = _reference(np.asarray(s1), np.asarray(s2))
    assert np.allclose(float(out_small), ref_small, rtol=1e-4, atol=1e-4), (
        float(out_small), ref_small)

    # Larger test exercising multiple row tiles and both column phases.
    s1b = jax.random.normal(k3, (272, 40), dtype=jnp.float32)
    s2b = 0.8 * jax.random.normal(k4, (200, 40), dtype=jnp.float32) + 0.3
    out_big = jax.block_until_ready(kl_div_loss_with_knn(s1b, s2b, k=1))
    ref_big = _reference(np.asarray(s1b), np.asarray(s2b))
    assert np.allclose(float(out_big), ref_big, rtol=2e-3, atol=2e-3), (
        float(out_big), ref_big)

    print("KERNEL_OK")
</pallas_src>

<mosaic_0001>
module attributes {stable_mosaic.version = 11 : i64} {
  func.func @_kl_knn_kernel(%arg0: i32, %arg1: i32, %arg2: memref<16x32xf32, #tpu.memory_space<vmem>>, %arg3: memref<16x1xf32, #tpu.memory_space<vmem>>, %arg4: memref<128x32xf32, #tpu.memory_space<vmem>>, %arg5: memref<1x128xf32, #tpu.memory_space<vmem>>, %arg6: memref<16x1xf32, #tpu.memory_space<vmem>>, %arg7: memref<16x1xf32, #tpu.memory_space<vmem>>, %arg8: memref<16x1xf32, #tpu.memory_space<vmem>>) attributes {dimension_semantics = [#tpu.dimension_semantics<parallel>, #tpu.dimension_semantics<arbitrary>], iteration_bounds = array<i64: 1, 2>, scalar_prefetch = 0 : i64, scratch_operands = 2 : i64, tpu.core_type = #tpu.core_type<tc>, window_params = [{transform_indices = @transform_0, window_bounds = array<i64: 16, 32>}, {transform_indices = @transform_1, window_bounds = array<i64: 16, 1>}, {transform_indices = @transform_2, window_bounds = array<i64: 128, 32>}, {transform_indices = @transform_3, window_bounds = array<i64: 1, 128>}, {transform_indices = @transform_4, window_bounds = array<i64: 16, 1>}]} {
    %c0_i32 = arith.constant 0 : i32
    %0 = arith.cmpi eq, %arg1, %c0_i32 : i32
    %1 = arith.extui %0 : i1 to i32
    %c0_i32_0 = arith.constant 0 : i32
    %2 = arith.cmpi ne, %1, %c0_i32_0 : i32
    scf.if %2 {
      %cst_18 = arith.constant 0x7F800000 : f32
      %39 = vector.broadcast %cst_18 : f32 to vector<16x1xf32>
      %c0_19 = arith.constant 0 : index
      %c0_20 = arith.constant 0 : index
      %40 = vector.load %arg7[%c0_19, %c0_20] : memref<16x1xf32, #tpu.memory_space<vmem>>, vector<16x1xf32>
      tpu.vector_store %arg7[%c0_19, %c0_20], %39 {strides = array<i32>} : memref<16x1xf32, #tpu.memory_space<vmem>>, vector<16x1xf32>,
      %cst_21 = arith.constant 0x7F800000 : f32
      %41 = vector.broadcast %cst_21 : f32 to vector<16x1xf32>
      %c0_22 = arith.constant 0 : index
      %c0_23 = arith.constant 0 : index
      %42 = vector.load %arg8[%c0_22, %c0_23] : memref<16x1xf32, #tpu.memory_space<vmem>>, vector<16x1xf32>
      tpu.vector_store %arg8[%c0_22, %c0_23], %41 {strides = array<i32>} : memref<16x1xf32, #tpu.memory_space<vmem>>, vector<16x1xf32>,
    } else {
    }
    %c0 = arith.constant 0 : index
    %c0_1 = arith.constant 0 : index
    %3 = vector.load %arg2[%c0, %c0_1] : memref<16x32xf32, #tpu.memory_space<vmem>>, vector<16x32xf32>
    %c0_2 = arith.constant 0 : index
    %c0_3 = arith.constant 0 : index
    %4 = vector.load %arg4[%c0_2, %c0_3] : memref<128x32xf32, #tpu.memory_space<vmem>>, vector<128x32xf32>
    %cst = arith.constant dense<0.000000e+00> : vector<16x128xf32>
    %5 = tpu.matmul %3, %4, %cst {dimension_numbers = #tpu.dot_dimension_numbers<[1], [1], [0], [0], [0, 0, 1, 0], [], []>} : vector<16x32xf32>, vector<128x32xf32>, vector<16x128xf32> -> vector<16x128xf32>
    %c0_4 = arith.constant 0 : index
    %c0_5 = arith.constant 0 : index
    %6 = vector.load %arg3[%c0_4, %c0_5] : memref<16x1xf32, #tpu.memory_space<vmem>>, vector<16x1xf32>
    %c0_6 = arith.constant 0 : index
    %c0_7 = arith.constant 0 : index
    %7 = vector.load %arg5[%c0_6, %c0_7] : memref<1x128xf32, #tpu.memory_space<vmem>>, vector<1x128xf32>
    %8 = vector.broadcast %6 : vector<16x1xf32> to vector<16x128xf32>
    %9 = vector.broadcast %7 : vector<1x128xf32> to vector<16x128xf32>
    %10 = arith.addf %8, %9 : vector<16x128xf32>
    %cst_8 = arith.constant 2.000000e+00 : f32
    %11 = vector.broadcast %cst_8 : f32 to vector<16x128xf32>
    %12 = arith.mulf %11, %5 : vector<16x128xf32>
    %13 = arith.subf %10, %12 : vector<16x128xf32>
    %cst_9 = arith.constant 0.000000e+00 : f32
    %14 = vector.broadcast %cst_9 : f32 to vector<16x128xf32>
    %15 = arith.maximumf %13, %14 : vector<16x128xf32>
    %c16_i32 = arith.constant 16 : i32
    %16 = arith.muli %arg0, %c16_i32 : i32
    %17 = tpu.iota {dimensions = array<i32: 0>} : vector<16x128xi32>
    %18 = vector.broadcast %16 : i32 to vector<16x128xi32>
    %19 = arith.addi %18, %17 : vector<16x128xi32>
    %c1_i32 = arith.constant 1 : i32
    %20 = arith.subi %arg1, %c1_i32 : i32
    %c128_i32 = arith.constant 128 : i32
    %21 = arith.muli %20, %c128_i32 : i32
    %22 = tpu.iota {dimensions = array<i32: 1>} : vector<16x128xi32>
    %23 = vector.broadcast %21 : i32 to vector<16x128xi32>
    %24 = arith.addi %23, %22 : vector<16x128xi32>
    %25 = arith.cmpi eq, %19, %24 : vector<16x128xi32>
    %cst_10 = arith.constant 0x7F800000 : f32
    %26 = vector.broadcast %cst_10 : f32 to vector<16x128xf32>
    %27 = arith.select %25, %26, %15 : vector<16x128xi1>, vector<16x128xf32>
    %cst_11 = arith.constant dense<0x7F800000> : vector<16xf32>
    %28 = vector.multi_reduction <minimumf>, %27, %cst_11 [1] : vector<16x128xf32> to vector<16xf32>
    %29 = vector.shape_cast %28 : vector<16xf32> to vector<16x1xf32>
    %c1_i32_12 = arith.constant 1 : i32
    %30 = arith.cmpi slt, %arg1, %c1_i32_12 : i32
    %31 = arith.extui %30 : i1 to i32
    %c0_i32_13 = arith.constant 0 : i32
    %32 = arith.cmpi ne, %31, %c0_i32_13 : i32
    scf.if %32 {
      %c0_18 = arith.constant 0 : index
      %c0_19 = arith.constant 0 : index
      %39 = vector.load %arg7[%c0_18, %c0_19] : memref<16x1xf32, #tpu.memory_space<vmem>>, vector<16x1xf32>
      %40 = arith.minimumf %39, %29 : vector<16x1xf32>
      %c0_20 = arith.constant 0 : index
      %c0_21 = arith.constant 0 : index
      %41 = vector.load %arg7[%c0_20, %c0_21] : memref<16x1xf32, #tpu.memory_space<vmem>>, vector<16x1xf32>
      tpu.vector_store %arg7[%c0_20, %c0_21], %40 {strides = array<i32>} : memref<16x1xf32, #tpu.memory_space<vmem>>, vector<16x1xf32>,
    } else {
    }
    %c1_i32_14 = arith.constant 1 : i32
    %33 = arith.cmpi sge, %arg1, %c1_i32_14 : i32
    %34 = arith.extui %33 : i1 to i32
    %c0_i32_15 = arith.constant 0 : i32
    %35 = arith.cmpi ne, %34, %c0_i32_15 : i32
    scf.if %35 {
      %c0_18 = arith.constant 0 : index
      %c0_19 = arith.constant 0 : index
      %39 = vector.load %arg8[%c0_18, %c0_19] : memref<16x1xf32, #tpu.memory_space<vmem>>, vector<16x1xf32>
      %40 = arith.minimumf %39, %29 : vector<16x1xf32>
      %c0_20 = arith.constant 0 : index
      %c0_21 = arith.constant 0 : index
      %41 = vector.load %arg8[%c0_20, %c0_21] : memref<16x1xf32, #tpu.memory_space<vmem>>, vector<16x1xf32>
      tpu.vector_store %arg8[%c0_20, %c0_21], %40 {strides = array<i32>} : memref<16x1xf32, #tpu.memory_space<vmem>>, vector<16x1xf32>,
    } else {
    }
    %c1_i32_16 = arith.constant 1 : i32
    %36 = arith.cmpi eq, %arg1, %c1_i32_16 : i32
    %37 = arith.extui %36 : i1 to i32
    %c0_i32_17 = arith.constant 0 : i32
    %38 = arith.cmpi ne, %37, %c0_i32_17 : i32
    scf.if %38 {
      %c16_i32_18 = arith.constant 16 : i32
      %39 = arith.muli %arg0, %c16_i32_18 : i32
      %40 = tpu.iota {dimensions = array<i32: 0>} : vector<16x1xi32>
      %41 = vector.broadcast %39 : i32 to vector<16x1xi32>
      %42 = arith.addi %41, %40 : vector<16x1xi32>
      %c16_i32_19 = arith.constant 16 : i32
      %43 = vector.broadcast %c16_i32_19 : i32 to vector<16x1xi32>
      %44 = arith.cmpi slt, %42, %43 : vector<16x1xi32>
      %c0_20 = arith.constant 0 : index
      %c0_21 = arith.constant 0 : index
      %45 = vector.load %arg7[%c0_20, %c0_21] : memref<16x1xf32, #tpu.memory_space<vmem>>, vector<16x1xf32>
      %46 = math.log %45 : vector<16x1xf32>
      %c0_22 = arith.constant 0 : index
      %c0_23 = arith.constant 0 : index
      %47 = vector.load %arg8[%c0_22, %c0_23] : memref<16x1xf32, #tpu.memory_space<vmem>>, vector<16x1xf32>
      %cst_24 = arith.constant 9.99999968E-21 : f32
      %48 = vector.broadcast %cst_24 : f32 to vector<16x1xf32>
      %49 = arith.maximumf %47, %48 : vector<16x1xf32>
      %50 = math.log %49 : vector<16x1xf32>
      %51 = arith.subf %46, %50 : vector<16x1xf32>
      %cst_25 = arith.constant 5.000000e-01 : f32
      %52 = vector.broadcast %cst_25 : f32 to vector<16x1xf32>
      %53 = arith.mulf %52, %51 : vector<16x1xf32>
      %cst_26 = arith.constant 0.000000e+00 : f32
      %54 = vector.broadcast %cst_26 : f32 to vector<16x1xf32>
      %55 = arith.select %44, %53, %54 : vector<16x1xi1>, vector<16x1xf32>
      %c0_27 = arith.constant 0 : index
      %c0_28 = arith.constant 0 : index
      %56 = vector.load %arg6[%c0_27, %c0_28] : memref<16x1xf32, #tpu.memory_space<vmem>>, vector<16x1xf32>
      tpu.vector_store %arg6[%c0_27, %c0_28], %55 {strides = array<i32>} : memref<16x1xf32, #tpu.memory_space<vmem>>, vector<16x1xf32>,
    } else {
    }
    return
  }
  func.func @transform_0(%arg0: i32, %arg1: i32) -> (i32, i32) {
    %c0_i32 = arith.constant 0 : i32
    %c0_i32_0 = arith.constant 0 : i32
    return %arg0, %c0_i32 : i32, i32
  }
  func.func @transform_1(%arg0: i32, %arg1: i32) -> (i32, i32) {
    %c0_i32 = arith.constant 0 : i32
    %c0_i32_0 = arith.constant 0 : i32
    return %arg0, %c0_i32 : i32, i32
  }
  func.func @transform_2(%arg0: i32, %arg1: i32) -> (i32, i32) {
    %c0_i32 = arith.constant 0 : i32
    %c0_i32_0 = arith.constant 0 : i32
    return %arg1, %c0_i32 : i32, i32
  }
  func.func @transform_3(%arg0: i32, %arg1: i32) -> (i32, i32) {
    %c0_i32 = arith.constant 0 : i32
    %c0_i32_0 = arith.constant 0 : i32
    return %c0_i32, %arg1 : i32, i32
  }
  func.func @transform_4(%arg0: i32, %arg1: i32) -> (i32, i32) {
    %c0_i32 = arith.constant 0 : i32
    %c0_i32_0 = arith.constant 0 : i32
    return %arg0, %c0_i32 : i32, i32
  }
}

</mosaic_0001>

<llo_original>
// kernel: tpu_custom_call.1
$region0: #{tpu_custom_call.1}
  #allocation0 [shape = 'u32[]', space=smem, size = 0x4, offset = 0x4, fixed_abs, tag = 'smem constant byte address 0x4 - core index']
  #allocation1 [shape = 'u32[144,128]{1,0:T(1,128)}', space=vmem, size = 0x12000, scoped, tag = 'internal scratch']
  #allocation2 [shape = 'f32[16,1]{1,0:T(8,128)}', space=vmem, size = 0x2000, scoped, tag = 'scratch operand']
  #allocation3 [shape = 'f32[16,1]{1,0:T(8,128)}', space=vmem, size = 0x2000, scoped, tag = 'scratch operand']
  %s0 = inlined_call_operand.vmem [shape: f32[16,32], index: 0, kind: input, shape index: {}]
  %s1 = inlined_call_operand.vmem [shape: f32[16,1], index: 1, kind: input, shape index: {}]
  %s2 = inlined_call_operand.vmem [shape: f32[256,32], index: 2, kind: input, shape index: {}]
  %s3 = inlined_call_operand.vmem [shape: f32[1,256], index: 3, kind: input, shape index: {}]
  %s4 = inlined_call_operand.vmem [shape: f32[16,1], index: 4, kind: output, shape index: {}]
  %s5 = sld [smem:[#allocation0]]
  $region65: #{tpu_custom_call.1} parent=0
    _
  %s7 = ssub.s32 1, %s5
  %s8 = scalar_select 0, %s7, %s5
  loop: start=0, step=1, limit=4
  $region2: #{tpu_custom_call.1} parent=0 // loop_pre_header
    _
  $region3: #{tpu_custom_call.1} parent=0 // loop_header
    %s10 = sphi 0, %s14
    %p11 = scmp.ge.s32.totalorder %s10, 4
    %s17 = sphi 0, %s29
    %s18 = sphi 0, %s25
    %s19 = sphi 0, %s17
    %s20 = sphi 0, %s18
    %s21 = sphi 0, %s19
    %s22 = sphi 0, %s20
    %s32 = sphi 0, %s34
    %s35 = sphi 0, %s32
    %s36 = sphi 0, %s35
    %s52 = sphi 0, %s36
    %s58 = sphi 0, %s60
    %s61 = sphi 0, %s58
    %s62 = sphi 0, %s61
    %s78 = sphi 0, %s62
    %s84 = sphi 0, %s86
    %s87 = sphi 0, %s84
    %s88 = sphi 0, %s87
    %s104 = sphi 0, %s88
    %s110 = sphi 0, %s112
    %s113 = sphi 0, %s110
    %s114 = sphi 0, %s113
    %s130 = sphi 0, %s114
    %s136 = sphi 0, %s138
    %s139 = sphi 0, %s136
    %s140 = sphi 0, %s139
    %s156 = sphi 0, %s140
  $region4: #{tpu_custom_call.1} parent=0 // loop_header_branch
    %13 = sbr.rel (%p11) target = $region8
  $region5: #{tpu_custom_call.1} parent=0 // loop_body
    %s15 = ssub.s32 %s10, 1
    %s16 = ssub.s32 %s10, 2
    %s23 = sadd.s32 1, %s18
    %p24 = scmp.ge.s32.totalorder %s23, 2
    %s25 = scalar_select %p24, 0, %s23
    %s26 = sadd.s32 1, %s17
    %s27 = scalar_select %p24, %s26, %s17
    %p28 = scmp.ge.s32.totalorder %s27, 1
    %s29 = scalar_select %p28, 0, %s27
    %s30 = ssub.s32 %s17, %s29
    %p31 = scmp.eq.s32.totalorder %s30, 0
    %s33 = sadd.s32 %s32, 1
    %s34 = scalar_select %p31, %s32, %s33
    %p37 = pneg %p31
    %p38 = scmp.eq.s32.totalorder %s10, 1
    %p39 = por %p37, %p38
    %p40 = scmp.ne.s32.totalorder %s32, %s35
    %p41 = scmp.eq.s32.totalorder %s10, 0
    %p42 = por %p40, %p41
    %p43 = scmp.ne.s32.totalorder %s32, %s35
    %p44 = scmp.eq.s32.totalorder %s15, 1
    %p45 = por %p43, %p44
    %p46 = scmp.ne.s32.totalorder %s35, %s36
    %p47 = scmp.eq.s32.totalorder %s15, 0
    %p48 = por %p46, %p47
    %p49 = scmp.ne.s32.totalorder %s35, %s36
    %p50 = scmp.eq.s32.totalorder %s16, 1
    %p51 = por %p49, %p50
    %p53 = scmp.ne.s32.totalorder %s36, %s52
    %p54 = scmp.eq.s32.totalorder %s16, 0
    %p55 = por %p53, %p54
    %s56 = ssub.s32 %s17, %s29
    %p57 = scmp.eq.s32.totalorder %s56, 0
    %s59 = sadd.s32 %s58, 1
    %s60 = scalar_select %p57, %s58, %s59
    %p63 = pneg %p57
    %p64 = scmp.eq.s32.totalorder %s10, 1
    %p65 = por %p63, %p64
    %p66 = scmp.ne.s32.totalorder %s58, %s61
    %p67 = scmp.eq.s32.totalorder %s10, 0
    %p68 = por %p66, %p67
    %p69 = scmp.ne.s32.totalorder %s58, %s61
    %p70 = scmp.eq.s32.totalorder %s15, 1
    %p71 = por %p69, %p70
    %p72 = scmp.ne.s32.totalorder %s61, %s62
    %p73 = scmp.eq.s32.totalorder %s15, 0
    %p74 = por %p72, %p73
    %p75 = scmp.ne.s32.totalorder %s61, %s62
    %p76 = scmp.eq.s32.totalorder %s16, 1
    %p77 = por %p75, %p76
    %p79 = scmp.ne.s32.totalorder %s62, %s78
    %p80 = scmp.eq.s32.totalorder %s16, 0
    %p81 = por %p79, %p80
    %s82 = ssub.s32 %s18, %s25
    %p83 = scmp.eq.s32.totalorder %s82, 0
    %s85 = sadd.s32 %s84, 1
    %s86 = scalar_select %p83, %s84, %s85
    %p89 = pneg %p83
    %p90 = scmp.eq.s32.totalorder %s10, 1
    %p91 = por %p89, %p90
    %p92 = scmp.ne.s32.totalorder %s84, %s87
    %p93 = scmp.eq.s32.totalorder %s10, 0
    %p94 = por %p92, %p93
    %p95 = scmp.ne.s32.totalorder %s84, %s87
    %p96 = scmp.eq.s32.totalorder %s15, 1
    %p97 = por %p95, %p96
    %p98 = scmp.ne.s32.totalorder %s87, %s88
    %p99 = scmp.eq.s32.totalorder %s15, 0
    %p100 = por %p98, %p99
    %p101 = scmp.ne.s32.totalorder %s87, %s88
    %p102 = scmp.eq.s32.totalorder %s16, 1
    %p103 = por %p101, %p102
    %p105 = scmp.ne.s32.totalorder %s88, %s104
    %p106 = scmp.eq.s32.totalorder %s16, 0
    %p107 = por %p105, %p106
    %s108 = ssub.s32 %s18, %s25
    %p109 = scmp.eq.s32.totalorder %s108, 0
    %s111 = sadd.s32 %s110, 1
    %s112 = scalar_select %p109, %s110, %s111
    %p115 = pneg %p109
    %p116 = scmp.eq.s32.totalorder %s10, 1
    %p117 = por %p115, %p116
    %p118 = scmp.ne.s32.totalorder %s110, %s113
    %p119 = scmp.eq.s32.totalorder %s10, 0
    %p120 = por %p118, %p119
    %p121 = scmp.ne.s32.totalorder %s110, %s113
    %p122 = scmp.eq.s32.totalorder %s15, 1
    %p123 = por %p121, %p122
    %p124 = scmp.ne.s32.totalorder %s113, %s114
    %p125 = scmp.eq.s32.totalorder %s15, 0
    %p126 = por %p124, %p125
    %p127 = scmp.ne.s32.totalorder %s113, %s114
    %p128 = scmp.eq.s32.totalorder %s16, 1
    %p129 = por %p127, %p128
    %p131 = scmp.ne.s32.totalorder %s114, %s130
    %p132 = scmp.eq.s32.totalorder %s16, 0
    %p133 = por %p131, %p132
    %s134 = ssub.s32 %s17, %s29
    %p135 = scmp.eq.s32.totalorder %s134, 0
    %s137 = sadd.s32 %s136, 1
    %s138 = scalar_select %p135, %s136, %s137
    %p141 = pneg %p135
    %p142 = scmp.eq.s32.totalorder %s10, 1
    %p143 = por %p141, %p142
    %p144 = scmp.ne.s32.totalorder %s136, %s139
    %p145 = scmp.eq.s32.totalorder %s10, 0
    %p146 = por %p144, %p145
    %p147 = scmp.ne.s32.totalorder %s136, %s139
    %p148 = scmp.eq.s32.totalorder %s15, 1
    %p149 = por %p147, %p148
    %p150 = scmp.ne.s32.totalorder %s139, %s140
    %p151 = scmp.eq.s32.totalorder %s15, 0
    %p152 = por %p150, %p151
    %p153 = scmp.ne.s32.totalorder %s139, %s140
    %p154 = scmp.eq.s32.totalorder %s16, 1
    %p155 = por %p153, %p154
    %p157 = scmp.ne.s32.totalorder %s140, %s156
    %p158 = scmp.eq.s32.totalorder %s16, 0
    %p159 = por %p157, %p158
    %p160 = scmp.le.s32.totalorder 1, %s10
    %p161 = scmp.lt.s32.totalorder %s10, 3
    %p162 = pnand %p160, %p161
    %p163 = pneg %p162
    // Predicated region
    $region9: #{tpu_custom_call.1} parent=5 // pred_check
      _
    $region10: #{tpu_custom_call.1} parent=5 // pred_check_branch
      %165 = sbr.rel (%p162) target = $region12
    $region11: #{tpu_custom_call.1} parent=5 // pred_region
      %s166 = ssub.s32 %s10, 1
      // Predicated region
      $region13: #{tpu_custom_call.1} parent=11 // pred_check
        %p167 = pneg %p48
      $region14: #{tpu_custom_call.1} parent=11 // pred_check_branch
        %169 = sbr.rel (%p167) target = $region16
      $region15: #{tpu_custom_call.1} parent=11 // pred_region
        %s170 = smul.u32 2, %s19
        %p171 = scmp.lt.s32.totalorder %s170, 1
        %s172 = scalar_select %p171, %s170, 1
        %s173 = smul.addr %s172, 8
        %s174 = scalar_lea.vmem %s0, %s173
        %s175 = smul.u32 2, %s19
      $region16: #{tpu_custom_call.1} parent=11 // pred_fallthru
        _
      // Predicated region
      $region17: #{tpu_custom_call.1} parent=11 // pred_check
        %p176 = pneg %p74
      $region18: #{tpu_custom_call.1} parent=11 // pred_check_branch
        %178 = sbr.rel (%p176) target = $region20
      $region19: #{tpu_custom_call.1} parent=11 // pred_region
        %s179 = smul.u32 2, %s19
        %p180 = scmp.lt.s32.totalorder %s179, 1
        %s181 = scalar_select %p180, %s179, 1
        %s182 = smul.addr %s181, 8
        %s183 = scalar_lea.vmem %s1, %s182
        %s184 = smul.u32 2, %s19
      $region20: #{tpu_custom_call.1} parent=11 // pred_fallthru
        _
    $region12: #{tpu_custom_call.1} parent=5 // pred_fallthru
      _
    %p185 = scmp.lt.s32.totalorder %s10, 2
    // Predicated region
    $region21: #{tpu_custom_call.1} parent=5 // pred_check
      %p186 = pneg %p185
    $region22: #{tpu_custom_call.1} parent=5 // pred_check_branch
      %188 = sbr.rel (%p186) target = $region24
    $region23: #{tpu_custom_call.1} parent=5 // pred_region
      // Predicated region
      $region25: #{tpu_custom_call.1} parent=23 // pred_check
        %p189 = pneg %p94
      $region26: #{tpu_custom_call.1} parent=23 // pred_check_branch
        %191 = sbr.rel (%p189) target = $region28
      $region27: #{tpu_custom_call.1} parent=23 // pred_region
        %s192 = smul.u32 16, %s18
        %p193 = scmp.lt.s32.totalorder %s192, 31
        %s194 = scalar_select %p193, %s192, 31
        %s195 = smul.addr %s194, 8
        %s196 = scalar_lea.vmem %s2, %s195
        %s197 = smul.u32 16, %s18
      $region28: #{tpu_custom_call.1} parent=23 // pred_fallthru
        _
      // Predicated region
      $region29: #{tpu_custom_call.1} parent=23 // pred_check
        %p198 = pneg %p120
      $region30: #{tpu_custom_call.1} parent=23 // pred_check_branch
        %200 = sbr.rel (%p198) target = $region32
      $region31: #{tpu_custom_call.1} parent=23 // pred_region
        %p201 = scmp.lt.s32.totalorder %s18, 1
        %s202 = scalar_select %p201, %s18, 1
        %s203 = scalar_lea.vmem %s3, %s202
      $region32: #{tpu_custom_call.1} parent=23 // pred_fallthru
        _
    $region24: #{tpu_custom_call.1} parent=5 // pred_fallthru
      _
    %p204 = scmp.le.s32.totalorder 1, %s10
    %p205 = scmp.lt.s32.totalorder %s10, 3
    %p206 = pnand %p204, %p205
    %p207 = pneg %p206
    // Predicated region
    $region33: #{tpu_custom_call.1} parent=5 // pred_check
      _
    $region34: #{tpu_custom_call.1} parent=5 // pred_check_branch
      %209 = sbr.rel (%p206) target = $region36
    $region35: #{tpu_custom_call.1} parent=5 // pred_region
      %s210 = ssub.s32 %s10, 1
      %s211 = smul.u32 2, %s19
      %p212 = scmp.lt.s32.totalorder %s211, 1
      %s213 = scalar_select %p212, %s211, 1
      %s214 = smul.addr %s213, 8
      %s215 = scalar_lea.vmem %s0, %s214
      %p216 = pneg %p48
      %p217 = pneg %p45
      %s218 = smul.u32 2, %s19
      %p219 = scmp.lt.s32.totalorder %s218, 1
      %s220 = scalar_select %p219, %s218, 1
      %s221 = smul.addr %s220, 8
      %s222 = scalar_lea.vmem %s1, %s221
      %p223 = pneg %p74
      %p224 = pneg %p71
      %s225 = smul.u32 16, %s20
      %p226 = scmp.lt.s32.totalorder %s225, 31
      %s227 = scalar_select %p226, %s225, 31
      %s228 = smul.addr %s227, 8
      %s229 = scalar_lea.vmem %s2, %s228
      %p230 = pneg %p100
      %p231 = pneg %p97
      %p232 = scmp.lt.s32.totalorder %s20, 1
      %s233 = scalar_select %p232, %s20, 1
      %s234 = scalar_lea.vmem %s3, %s233
      %p235 = pneg %p126
      %p236 = pneg %p123
      %p237 = pneg %p152
      %p238 = pneg %p149
      %s239 = smul.u32 2, %s19
      %p240 = scmp.lt.s32.totalorder %s239, 1
      %s241 = scalar_select %p240, %s239, 1
      %s242 = smul.addr %s241, 8
      %s243 = scalar_lea.vmem %s4, %s242
      %s244 = smul.u32 2, %s19
      %p245 = scmp.lt.s32.totalorder %s244, 1
      %s246 = scalar_select %p245, %s244, 1
      %s247 = smul.addr %s246, 8
      %s248 = scalar_lea.vmem %s0, %s247
      %s249 = smul.u32 2, %s19
      %s250 = smul.u32 2, %s19
      %p251 = scmp.lt.s32.totalorder %s250, 1
      %s252 = scalar_select %p251, %s250, 1
      %s253 = smul.addr %s252, 8
      %s254 = scalar_lea.vmem %s1, %s253
      %s255 = smul.u32 2, %s19
      %s256 = smul.u32 16, %s20
      %p257 = scmp.lt.s32.totalorder %s256, 31
      %s258 = scalar_select %p257, %s256, 31
      %s259 = smul.addr %s258, 8
      %s260 = scalar_lea.vmem %s2, %s259
      %s261 = smul.u32 16, %s20
      %p262 = scmp.lt.s32.totalorder %s20, 1
      %s263 = scalar_select %p262, %s20, 1
      %s264 = scalar_lea.vmem %s3, %s263
      %s265 = smul.u32 2, %s19
      %p266 = scmp.lt.s32.totalorder %s265, 1
      %s267 = scalar_select %p266, %s265, 1
      %s268 = smul.addr %s267, 8
      %s269 = scalar_lea.vmem %s4, %s268
      %s270 = smul.u32 2, %s19
      %p271 = scmp.eq.s32.totalorder %s20, 0
      // Predicated region
      $region37: #{tpu_custom_call.1} parent=35 // pred_check
        %p272 = pneg %p271
      $region38: #{tpu_custom_call.1} parent=35 // pred_check_branch
        %274 = sbr.rel (%p272) target = $region40
      $region39: #{tpu_custom_call.1} parent=35 // pred_region
        %vm275 = vcmask 7168
        %276 = vst.msk [vmem:[#allocation2] sm:$0xff] %vm275, inf
        %277 = vst.msk [vmem:[#allocation2 + $0x8] sm:$0xff] %vm275, inf
        %278 = vst.msk [vmem:[#allocation3] sm:$0xff] %vm275, inf
        %279 = vst.msk [vmem:[#allocation3 + $0x8] sm:$0xff] %vm275, inf
      $region40: #{tpu_custom_call.1} parent=35 // pred_fallthru
        _
      %v280 = vld [vmem:[%s248] sm:$0xff]
      %v281 = vld [vmem:[%s248 + $0x8] sm:$0xff]
      %v282 = vld [vmem:[%s260] sm:$0xff]
      %v283 = vld [vmem:[%s260 + $0x8] sm:$0xff]
      %v284 = vld [vmem:[%s260 + $0x10] sm:$0xff]
      %v285 = vld [vmem:[%s260 + $0x18] sm:$0xff]
      %v286 = vld [vmem:[%s260 + $0x20] sm:$0xff]
      %v287 = vld [vmem:[%s260 + $0x28] sm:$0xff]
      %v288 = vld [vmem:[%s260 + $0x30] sm:$0xff]
      %v289 = vld [vmem:[%s260 + $0x38] sm:$0xff]
      %v290 = vld [vmem:[%s260 + $0x40] sm:$0xff]
      %v291 = vld [vmem:[%s260 + $0x48] sm:$0xff]
      %v292 = vld [vmem:[%s260 + $0x50] sm:$0xff]
      %v293 = vld [vmem:[%s260 + $0x58] sm:$0xff]
      %v294 = vld [vmem:[%s260 + $0x60] sm:$0xff]
      %v295 = vld [vmem:[%s260 + $0x68] sm:$0xff]
      %v296 = vld [vmem:[%s260 + $0x70] sm:$0xff]
      %v297 = vld [vmem:[%s260 + $0x78] sm:$0xff]
      %vm298 = vcmask 261120
      %v300 = vsel %vm298, %v280, 0
      %v303 = vsel %vm298, %v281, 0
      %v306 = vsel %vm298, %v282, 0
      %v309 = vsel %vm298, %v283, 0
      %v312 = vsel %vm298, %v284, 0
      %v315 = vsel %vm298, %v285, 0
      %v318 = vsel %vm298, %v286, 0
      %v321 = vsel %vm298, %v287, 0
      %v324 = vsel %vm298, %v288, 0
      %v327 = vsel %vm298, %v289, 0
      %v330 = vsel %vm298, %v290, 0
      %v333 = vsel %vm298, %v291, 0
      %v336 = vsel %vm298, %v292, 0
      %v339 = vsel %vm298, %v293, 0
      %v342 = vsel %vm298, %v294, 0
      %v345 = vsel %vm298, %v295, 0
      %v348 = vsel %vm298, %v296, 0
      %v351 = vsel %vm298, %v297, 0
      %353 = vmatprep.subr.mxu0 0.0
      %354 = vmatpush1.xpose.msra.mxu0 %v351
      %355 = vmatprep.subr.mxu0 0.0
      %356 = vmatpush1.xpose.msra.mxu0 %v348
      %357 = vmatprep.subr.mxu0 0.0
      %358 = vmatpush1.xpose.msra.mxu0 %v345
      %359 = vmatprep.subr.mxu0 0.0
      %360 = vmatpush1.xpose.msra.mxu0 %v342
      %361 = vmatprep.subr.mxu0 0.0
      %362 = vmatpush1.xpose.msra.mxu0 %v339
      %363 = vmatprep.subr.mxu0 0.0
      %364 = vmatpush1.xpose.msra.mxu0 %v336
      %365 = vmatprep.subr.mxu0 0.0
      %366 = vmatpush1.xpose.msra.mxu0 %v333
      %367 = vmatprep.subr.mxu0 0.0
      %368 = vmatpush1.xpose.msra.mxu0 %v330
      %369 = vmatprep.subr.mxu0 0.0
      %370 = vmatpush1.xpose.msra.mxu0 %v327
      %371 = vmatprep.subr.mxu0 0.0
      %372 = vmatpush1.xpose.msra.mxu0 %v324
      %373 = vmatprep.subr.mxu0 0.0
      %374 = vmatpush1.xpose.msra.mxu0 %v321
      %375 = vmatprep.subr.mxu0 0.0
      %376 = vmatpush1.xpose.msra.mxu0 %v318
      %377 = vmatprep.subr.mxu0 0.0
      %378 = vmatpush1.xpose.msra.mxu0 %v315
      %379 = vmatprep.subr.mxu0 0.0
      %380 = vmatpush1.xpose.msra.mxu0 %v312
      %381 = vmatprep.subr.mxu0 0.0
      %382 = vmatpush1.xpose.msra.mxu0 %v309
      %383 = vmatprep.subr.mxu0 0.0
      %384 = vmatpush1.xpose.msra.mxu0 %v306
      %385 = vmatprep.subr.mxu0 0.0
      %386 = vmatpush2.xpose.msra.mxu0 0.0
      %387 = vmatprep.subr.mxu0 0.0
      %388 = vmatpush2.xpose.msra.mxu0 0.0
      %389 = vmatprep.subr.mxu0 0.0
      %390 = vmatpush2.xpose.msra.mxu0 0.0
      %391 = vmatprep.subr.mxu0 0.0
      %392 = vmatpush2.xpose.msra.mxu0 0.0
      %393 = vmatprep.subr.mxu0 0.0
      %394 = vmatpush2.xpose.msra.mxu0 0.0
      %395 = vmatprep.subr.mxu0 0.0
      %396 = vmatpush2.xpose.msra.mxu0 0.0
      %397 = vmatprep.subr.mxu0 0.0
      %398 = vmatpush2.xpose.msra.mxu0 0.0
      %399 = vmatprep.subr.mxu0 0.0
      %400 = vmatpush2.xpose.msra.mxu0 0.0
      %401 = vmatprep.subr.mxu0 0.0
      %402 = vmatpush2.xpose.msra.mxu0 0.0
      %403 = vmatprep.subr.mxu0 0.0
      %404 = vmatpush2.xpose.msra.mxu0 0.0
      %405 = vmatprep.subr.mxu0 0.0
      %406 = vmatpush2.xpose.msra.mxu0 0.0
      %407 = vmatprep.subr.mxu0 0.0
      %408 = vmatpush2.xpose.msra.mxu0 0.0
      %409 = vmatprep.subr.mxu0 0.0
      %410 = vmatpush2.xpose.msra.mxu0 0.0
      %411 = vmatprep.subr.mxu0 0.0
      %412 = vmatpush2.xpose.msra.mxu0 0.0
      %413 = vmatprep.subr.mxu0 0.0
      %414 = vmatpush2.xpose.msra.mxu0 0.0
      %415 = vmatprep.subr.mxu0 0.0
      %416 = vmatpush2.xpose.msra.mxu0 0.0
      %417 = vmatprep.mubr.f32.mxu0 0.0
      %418 = vmatmul.mubr.f32.gmra.mxu0 %v300
      %v419 = vpop.f32.mrf.mxu0
      %v420 = vadd.f32 0.0, %v419
      %v421 = vpop.f32.mrf.mxu0
      %422 = vmatprep.mubr.f32.mxu0 0.0
      %423 = vmatmul.mubr.f32.gmra.mxu0 %v303
      %v424 = vpop.f32.mrf.mxu0
      %v425 = vadd.f32 0.0, %v424
      %v426 = vpop.f32.mrf.mxu0
      %427 = vdwg.mxu0
      %v428 = vld [vmem:[%s254] sm:$0xff]
      %v429 = vld [vmem:[%s254 + $0x8] sm:$0xff]
      %v430 = vld [vmem:[%s264] sm:$0x1]
      %432 = vset.pattern.permute.xlu0 0
      %433 = vperm.xlu0 %432, %v428
      %v434 = vpop.permute.xlu0 %433
      %437 = vset.pattern.permute.xlu0 0
      %438 = vperm.xlu0 %437, %v429
      %v439 = vpop.permute.xlu0 %438
      %v442 = vlaneseq
      %v443 = vshrl.u32 %v442, 7
      %v444 = vsub.s32 0, %v443
      %v445 = vrot.slane %v430, %v444
      %v447 = vadd.f32 %v434, %v445
      %v448 = vadd.f32 %v439, %v445
      %v449 = vmul.f32 %v420, 2.0
      %v450 = vmul.f32 %v425, 2.0
      %v451 = vsub.f32 %v447, %v449
      %v452 = vsub.f32 %v448, %v450
      %v453 = vmax.f32 %v451, 0.0
      %v454 = vmax.f32 %v452, 0.0
      %s455 = smul.u32 %s19, 16
      %v456 = vlaneseq
      %v457 = vshrl.u32 %v456, 7
      %v458 = vadd.s32 %v457, 8
      %v459 = vstv %s455
      %v460 = vadd.s32 %v459, %v457
      %v461 = vadd.s32 %v459, %v458
      %s462 = ssub.s32 %s20, 1
      %s463 = smul.u32 %s462, 128
      %v464 = vlaneseq
      %v465 = vand.u32 %v464, 127
      %v466 = vstv %s463
      %v467 = vadd.s32 %v466, %v465
      %vm468 = vcmp.eq.s32.totalorder %v460, %v467
      %vm469 = vcmp.eq.s32.totalorder %v461, %v467
      %v470 = vsel %vm468, inf, %v453
      %v471 = vsel %vm469, inf, %v454
      %472 = vmin.xlane.f32.xlu0 %v470
      %v473 = vpop.xlane.xlu0 %472
      %474 = vmin.xlane.f32.xlu0 %v471
      %v475 = vpop.xlane.xlu0 %474
      %p476 = scmp.lt.s32.totalorder %s20, 1
      // Predicated region
      $region41: #{tpu_custom_call.1} parent=35 // pred_check
        %p477 = pneg %p476
      $region42: #{tpu_custom_call.1} parent=35 // pred_check_branch
        %479 = sbr.rel (%p477) target = $region44
      $region43: #{tpu_custom_call.1} parent=35 // pred_region
        %v480 = vld [vmem:[#allocation2] sm:$0xff]
        %v481 = vld [vmem:[#allocation2 + $0x8] sm:$0xff]
        %v482 = vmin.f32 %v480, %v473
        %v483 = vmin.f32 %v481, %v475
        %vm484 = vcmask 7168
        %485 = vst.msk [vmem:[#allocation2] sm:$0xff] %vm484, %v482
        %486 = vst.msk [vmem:[#allocation2 + $0x8] sm:$0xff] %vm484, %v483
      $region44: #{tpu_custom_call.1} parent=35 // pred_fallthru
        _
      %p487 = scmp.ge.s32.totalorder %s20, 1
      // Predicated region
      $region45: #{tpu_custom_call.1} parent=35 // pred_check
        %p488 = pneg %p487
      $region46: #{tpu_custom_call.1} parent=35 // pred_check_branch
        %490 = sbr.rel (%p488) target = $region48
      $region47: #{tpu_custom_call.1} parent=35 // pred_region
        %v491 = vld [vmem:[#allocation3] sm:$0xff]
        %v492 = vld [vmem:[#allocation3 + $0x8] sm:$0xff]
        %v493 = vmin.f32 %v491, %v473
        %v494 = vmin.f32 %v492, %v475
        %vm495 = vcmask 7168
        %496 = vst.msk [vmem:[#allocation3] sm:$0xff] %vm495, %v493
        %497 = vst.msk [vmem:[#allocation3 + $0x8] sm:$0xff] %vm495, %v494
      $region48: #{tpu_custom_call.1} parent=35 // pred_fallthru
        _
      %p498 = scmp.eq.s32.totalorder %s20, 1
      // Predicated region
      $region49: #{tpu_custom_call.1} parent=35 // pred_check
        %p499 = pneg %p498
      $region50: #{tpu_custom_call.1} parent=35 // pred_check_branch
        %501 = sbr.rel (%p499) target = $region52
      $region51: #{tpu_custom_call.1} parent=35 // pred_region
        %vm502 = vcmp.lt.s32.totalorder %v460, 16
        %vm503 = vcmp.lt.s32.totalorder %v461, 16
        %v504 = vld [vmem:[#allocation2] sm:$0xff]
        %v505 = vld [vmem:[#allocation2 + $0x8] sm:$0xff]
        %v506 = vlog2.pop %v504
        %v507 = vmul.f32 %v506, 0.6931472
        %v508 = vlog2.pop %v505
        %v509 = vmul.f32 %v508, 0.6931472
        %v510 = vld [vmem:[#allocation3] sm:$0xff]
        %v511 = vld [vmem:[#allocation3 + $0x8] sm:$0xff]
        %v512 = vmax.f32 %v510, 1e-20
        %v513 = vmax.f32 %v511, 1e-20
        %v514 = vlog2.pop %v512
        %v515 = vmul.f32 %v514, 0.6931472
        %v516 = vlog2.pop %v513
        %v517 = vmul.f32 %v516, 0.6931472
        %v518 = vsub.f32 %v507, %v515
        %v519 = vsub.f32 %v509, %v517
        %v520 = vmul.f32 %v518, 0.5
        %v521 = vmul.f32 %v519, 0.5
        %v522 = vsel %vm502, %v520, 0.0
        %v523 = vsel %vm503, %v521, 0.0
        %vm524 = vcmask 7168
        %525 = vst.msk [vmem:[%s269] sm:$0xff] %vm524, %v522
        %526 = vst.msk [vmem:[%s269 + $0x8] sm:$0xff] %vm524, %v523
      $region52: #{tpu_custom_call.1} parent=35 // pred_fallthru
        _
      %s527 = smul.u32 2, %s19
      %p528 = scmp.lt.s32.totalorder %s527, 1
      %s529 = scalar_select %p528, %s527, 1
      %s530 = smul.addr %s529, 8
      %s531 = scalar_lea.vmem %s4, %s530
      // Predicated region
      $region53: #{tpu_custom_call.1} parent=35 // pred_check
        %p532 = pneg %p149
      $region54: #{tpu_custom_call.1} parent=35 // pred_check_branch
        %534 = sbr.rel (%p532) target = $region56
      $region55: #{tpu_custom_call.1} parent=35 // pred_region
        %s535 = smul.u32 2, %s19
      $region56: #{tpu_custom_call.1} parent=35 // pred_fallthru
        _
      // Predicated region
      $region57: #{tpu_custom_call.1} parent=35 // pred_check
        %p536 = pneg %p149
      $region58: #{tpu_custom_call.1} parent=35 // pred_check_branch
        %538 = sbr.rel (%p536) target = $region60
      $region59: #{tpu_custom_call.1} parent=35 // pred_region
        %s539 = smul.u32 2, %s19
        %p540 = scmp.lt.s32.totalorder %s539, 1
        %s541 = scalar_select %p540, %s539, 1
        %s542 = smul.addr %s541, 8
        %s543 = scalar_lea.vmem %s4, %s542
      $region60: #{tpu_custom_call.1} parent=35 // pred_fallthru
        _
    $region36: #{tpu_custom_call.1} parent=5 // pred_fallthru
      _
    %p544 = scmp.le.s32.totalorder 2, %s10
    // Predicated region
    $region61: #{tpu_custom_call.1} parent=5 // pred_check
      %p545 = pneg %p544
    $region62: #{tpu_custom_call.1} parent=5 // pred_check_branch
      %547 = sbr.rel (%p545) target = $region64
    $region63: #{tpu_custom_call.1} parent=5 // pred_region
      %s548 = ssub.s32 %s10, 2
    $region64: #{tpu_custom_call.1} parent=5 // pred_fallthru
      _
  $region6: #{tpu_custom_call.1} parent=0 // loop_footer
    %s14 = sadd.s32 1, %s10
  $region7: #{tpu_custom_call.1} parent=0 // loop_footer_branch
    %9 = sbr.rel target = $region3
  $region8: #{tpu_custom_call.1} parent=0 // loop_exit
    _

</llo_original>
